<compile_context>
chip_gen: v5e
topology: v5e:2x2
jax: 0.10.0
libtpu: 0.0.40
codegen_flags: <defaults>
</compile_context>

<pallas_src>
import jax
import jax.numpy as jnp
from jax.experimental import pallas as pl
from jax.experimental.pallas import tpu as pltpu


def _round_up(x, m):
    return ((x + m - 1) // m) * m


def _make_attention_gate_kernel(f_g, f_l, use_mxu):
    def kernel(g_ref, x_ref, wg_ref, wx_ref, wpsi_ref, o_ref):
        # g_ref: (F_g, tm), x_ref: (F_l, tm)  (channels = sublanes, pixels = lanes)
        # wg_ref: (F_int, F_g), wx_ref: (F_int, F_l), wpsi_ref: (F_int, 1) f32
        x = x_ref[...]

        if use_mxu:
            # Both 1x1 convs as (F_int, C) @ (C, tm) MXU matmuls, f32 accumulation.
            a = (jnp.dot(wg_ref[...], g_ref[...],
                         preferred_element_type=jnp.float32)
                 + jnp.dot(wx_ref[...], x, preferred_element_type=jnp.float32))
        else:
            # Tiny channel counts: an (F_int, C<=8) matmul uses <1% of the MXU but
            # still pays MXU push/result-FIFO latency every step; a few unrolled
            # VPU broadcast-MACs are cheaper and keep the MXU off the critical path.
            a = None
            for c in range(f_g):
                term = (wg_ref[:, c:c + 1].astype(jnp.float32)
                        * g_ref[c:c + 1, :].astype(jnp.float32))
                a = term if a is None else a + term
            for c in range(f_l):
                a = a + (wx_ref[:, c:c + 1].astype(jnp.float32)
                         * x_ref[c:c + 1, :].astype(jnp.float32))

        a = jnp.maximum(a, 0.0)                                     # ReLU

        # psi logits stay off the MXU: VPU column-broadcast multiply + sublane
        # (XLU) reduce.  Garbage lanes of a partial tail tile only produce values
        # that are masked on store (pixels never mix across lanes).
        logits = jnp.sum(a * wpsi_ref[...], axis=0, keepdims=True)  # (1, tm) f32
        psi = jax.nn.sigmoid(logits)                                # EUP
        o_ref[...] = (x * psi).astype(o_ref.dtype)                  # bcast over F_l

    return kernel


def _vmem_config():
    """(tile VMEM budget, vmem_limit_bytes) tuned per chip generation."""
    budget, limit = 18 * 1024 * 1024, 32 * 1024 * 1024   # v7x (64 MiB) / unknown
    try:
        info = pltpu.get_tpu_info()
        cap = int(getattr(info, "vmem_capacity_bytes", 0) or 0)
        if cap >= 100 * 1024 * 1024:                      # v5e / v6e: 128 MiB VMEM
            budget, limit = 48 * 1024 * 1024, 64 * 1024 * 1024
    except Exception:
        pass
    return budget, limit


def _choose_pixel_tile(hw, n_images, f_g, f_l, f_int, in_itemsize, out_itemsize,
                       vmem_budget_bytes):
    """Largest pixel tile (multiple of 128, capped at 1024) within the budget.

    tm need not divide hw: the grid uses cdiv and the partial last tile is
    masked on store (pixels are independent across lanes).
    """
    # Sublane-padded channel extents (what the VMEM tiles actually occupy).
    sub_in = max(1, 32 // max(1, in_itemsize))      # 8 for f32, 16 for bf16
    sub_out = max(1, 32 // max(1, out_itemsize))
    fg_p = _round_up(f_g, sub_in)
    fl_p = _round_up(f_l, sub_in)
    fl_o = _round_up(f_l, sub_out)
    fi_p = _round_up(f_int, 8)                      # f32 intermediates

    per_pixel = (2 * (fg_p + fl_p) * in_itemsize    # double-buffered g + x inputs
                 + 2 * fl_o * out_itemsize          # double-buffered output
                 + 4 * 2 * fi_p                     # f32 (F_int, tm) acc + relu temp
                 + 4 * fl_p                         # f32 (F_l, tm) x*psi pre-cast temp
                 + 4 * 8)                           # (1, tm) logits/psi + slack

    max_tm = _round_up(hw, 128)
    tm = 128
    for cand in (256, 512, 1024):                   # 2048 dropped: no BW gain
        if cand <= max_tm and cand * per_pixel <= vmem_budget_bytes:
            tm = cand
    tm = min(tm, max_tm)

    # v7x megacore: ensure >= 2 grid steps so both TensorCores get work
    # (harmless on single-TC v5e/v6e).
    if n_images * pl.cdiv(hw, tm) < 2 and hw > 128:
        tm = max(128, _round_up(pl.cdiv(hw, 2), 128))
    return tm


def attention_gate(g_nchw, x_nchw, w_g, w_x, w_psi, *, tm=None):
    """g_nchw: (N, F_g, H, W); x_nchw: (N, F_l, H, W).

    w_g:   (F_int, F_g)  -- PyTorch Conv2d 1x1 weight with kernel dims squeezed
    w_x:   (F_int, F_l)
    w_psi: (1, F_int)
    Returns (N, F_l, H, W).
    """
    N, F_g, H, W = g_nchw.shape
    _, F_l, _, _ = x_nchw.shape
    F_int = w_g.shape[0]
    HW = H * W
    act_dtype = x_nchw.dtype

    # Free reshapes -- no extra HBM transpose passes.
    g3 = g_nchw.reshape(N, F_g, HW)
    x3 = x_nchw.reshape(N, F_l, HW)

    # One-time weight dtype hygiene (tiny arrays): MXU operands match the
    # activation dtypes; w_psi stays f32 since it multiplies the f32 accumulator.
    w_g = w_g.astype(g_nchw.dtype)
    w_x = w_x.astype(act_dtype)
    wpsi_col = jnp.reshape(w_psi, (F_int, 1)).astype(jnp.float32)

    vmem_budget, vmem_limit = _vmem_config()
    if tm is None:
        tm = _choose_pixel_tile(
            HW, N, F_g, F_l, F_int,
            in_itemsize=max(jnp.dtype(g_nchw.dtype).itemsize,
                            jnp.dtype(act_dtype).itemsize),
            out_itemsize=jnp.dtype(act_dtype).itemsize,
            vmem_budget_bytes=vmem_budget)

    grid = (N, pl.cdiv(HW, tm))
    use_mxu = not (F_g <= 8 and F_l <= 8 and F_int <= 16)

    # TODO(synk): if profiling shows exposed DMA on small-tile configs, add
    # pipeline_mode=pl.Buffered(3) on the two activation BlockSpecs.
    out3 = pl.pallas_call(
        _make_attention_gate_kernel(F_g, F_l, use_mxu),
        out_shape=jax.ShapeDtypeStruct((N, F_l, HW), act_dtype),
        grid_spec=pltpu.PrefetchScalarGridSpec(
            num_scalar_prefetch=0,
            grid=grid,
            in_specs=[
                # N dim squeezed out of the kernel view; pixels on the lane axis.
                pl.BlockSpec((None, F_g, tm), lambda n, p: (n, 0, p)),
                pl.BlockSpec((None, F_l, tm), lambda n, p: (n, 0, p)),
                # Weights stay VMEM-resident across the whole grid.
                pl.BlockSpec((F_int, F_g), lambda n, p: (0, 0)),
                pl.BlockSpec((F_int, F_l), lambda n, p: (0, 0)),
                pl.BlockSpec((F_int, 1), lambda n, p: (0, 0)),
            ],
            out_specs=pl.BlockSpec((None, F_l, tm), lambda n, p: (n, 0, p)),
        ),
        compiler_params=pltpu.CompilerParams(
            dimension_semantics=("parallel", "parallel"),
            vmem_limit_bytes=vmem_limit),
    )(g3, x3, w_g, w_x, wpsi_col)

    return out3.reshape(N, F_l, H, W)   # free reshape back to NCHW


def attention_gate_ref(g_nchw, x_nchw, w_g, w_x, w_psi):
    """Pure-JAX reference mirroring the PyTorch forward (full-precision dots)."""
    hp = jax.lax.Precision.HIGHEST
    g1 = jnp.einsum('nchw,oc->nohw', g_nchw, w_g, precision=hp)
    x1 = jnp.einsum('nchw,oc->nohw', x_nchw, w_x, precision=hp)
    a = jax.nn.relu(g1 + x1)
    psi = jax.nn.sigmoid(jnp.einsum('nchw,oc->nohw', a, w_psi, precision=hp))
    return x_nchw * psi


if __name__ == "__main__":
    root = jax.random.PRNGKey(0)
    keys = jax.random.split(root, 10)

    # --- Case 1: module-scale demo (tiny channels -> VPU path, even grid). ---
    N, F_g, F_l, F_int, H, W = 2, 4, 4, 8, 16, 16
    g = jax.random.normal(keys[0], (N, F_g, H, W), dtype=jnp.float32)
    x = jax.random.normal(keys[1], (N, F_l, H, W), dtype=jnp.float32)
    w_g = jax.random.normal(keys[2], (F_int, F_g), dtype=jnp.float32) * 0.1
    w_x = jax.random.normal(keys[3], (F_int, F_l), dtype=jnp.float32) * 0.1
    w_psi = jax.random.normal(keys[4], (1, F_int), dtype=jnp.float32) * 0.1

    out = jax.block_until_ready(attention_gate(g, x, w_g, w_x, w_psi))
    ref = attention_gate_ref(g, x, w_g, w_x, w_psi)
    assert out.shape == (N, F_l, H, W)
    assert jnp.allclose(out, ref, atol=1e-5, rtol=1e-5), "case 1 mismatch"

    # --- Case 2: MXU path + non-128-multiple spatial size (masked tail tile)
    #     + single image (exercises the >=2-grid-step megacore split). ---
    N2, F_g2, F_l2, F_int2, H2, W2 = 1, 16, 32, 16, 10, 24
    g2 = jax.random.normal(keys[5], (N2, F_g2, H2, W2), dtype=jnp.float32)
    x2 = jax.random.normal(keys[6], (N2, F_l2, H2, W2), dtype=jnp.float32)
    w_g2 = jax.random.normal(keys[7], (F_int2, F_g2), dtype=jnp.float32) * 0.1
    w_x2 = jax.random.normal(keys[8], (F_int2, F_l2), dtype=jnp.float32) * 0.1
    w_psi2 = jax.random.normal(keys[9], (1, F_int2), dtype=jnp.float32) * 0.1

    out2 = jax.block_until_ready(attention_gate(g2, x2, w_g2, w_x2, w_psi2))
    ref2 = attention_gate_ref(g2, x2, w_g2, w_x2, w_psi2)
    assert out2.shape == (N2, F_l2, H2, W2)
    assert jnp.allclose(out2, ref2, atol=5e-3, rtol=5e-3), "case 2 mismatch"

    print("KERNEL_OK")
</pallas_src>

<mosaic_0001>
module attributes {stable_mosaic.version = 11 : i64} {
  func.func @kernel(%arg0: i32, %arg1: i32, %arg2: memref<1x4x256xf32, #tpu.memory_space<vmem>>, %arg3: memref<1x4x256xf32, #tpu.memory_space<vmem>>, %arg4: memref<8x4xf32, #tpu.memory_space<vmem>>, %arg5: memref<8x4xf32, #tpu.memory_space<vmem>>, %arg6: memref<8x1xf32, #tpu.memory_space<vmem>>, %arg7: memref<1x4x256xf32, #tpu.memory_space<vmem>>) attributes {dimension_semantics = [#tpu.dimension_semantics<parallel>, #tpu.dimension_semantics<parallel>], iteration_bounds = array<i64: 2, 1>, scalar_prefetch = 0 : i64, scratch_operands = 0 : i64, tpu.core_type = #tpu.core_type<tc>, window_params = [{transform_indices = @transform_0, window_bounds = array<i64: 1, 4, 256>}, {transform_indices = @transform_1, window_bounds = array<i64: 1, 4, 256>}, {pipeline_mode = #tpu.pipeline_mode<synchronous>, transform_indices = @transform_2, window_bounds = array<i64: 8, 4>}, {pipeline_mode = #tpu.pipeline_mode<synchronous>, transform_indices = @transform_3, window_bounds = array<i64: 8, 4>}, {pipeline_mode = #tpu.pipeline_mode<synchronous>, transform_indices = @transform_4, window_bounds = array<i64: 8, 1>}, {transform_indices = @transform_5, window_bounds = array<i64: 1, 4, 256>}]} {
    %c0 = arith.constant 0 : index
    %c0_0 = arith.constant 0 : index
    %c0_1 = arith.constant 0 : index
    %0 = vector.load %arg3[%c0, %c0_0, %c0_1] : memref<1x4x256xf32, #tpu.memory_space<vmem>>, vector<1x4x256xf32>
    %1 = vector.shape_cast %0 : vector<1x4x256xf32> to vector<4x256xf32>
    %c0_2 = arith.constant 0 : index
    %c0_3 = arith.constant 0 : index
    %2 = vector.load %arg4[%c0_2, %c0_3] : memref<8x4xf32, #tpu.memory_space<vmem>>, vector<8x1xf32>
    %c0_4 = arith.constant 0 : index
    %c0_5 = arith.constant 0 : index
    %c0_6 = arith.constant 0 : index
    %3 = vector.load %arg2[%c0_4, %c0_5, %c0_6] : memref<1x4x256xf32, #tpu.memory_space<vmem>>, vector<1x1x256xf32>
    %4 = vector.shape_cast %3 : vector<1x1x256xf32> to vector<1x256xf32>
    %5 = vector.broadcast %2 : vector<8x1xf32> to vector<8x256xf32>
    %6 = vector.broadcast %4 : vector<1x256xf32> to vector<8x256xf32>
    %7 = arith.mulf %5, %6 : vector<8x256xf32>
    %c0_7 = arith.constant 0 : index
    %c1 = arith.constant 1 : index
    %8 = vector.load %arg4[%c0_7, %c1] : memref<8x4xf32, #tpu.memory_space<vmem>>, vector<8x1xf32>
    %c0_8 = arith.constant 0 : index
    %c1_9 = arith.constant 1 : index
    %c0_10 = arith.constant 0 : index
    %9 = vector.load %arg2[%c0_8, %c1_9, %c0_10] : memref<1x4x256xf32, #tpu.memory_space<vmem>>, vector<1x1x256xf32>
    %10 = vector.shape_cast %9 : vector<1x1x256xf32> to vector<1x256xf32>
    %11 = vector.broadcast %8 : vector<8x1xf32> to vector<8x256xf32>
    %12 = vector.broadcast %10 : vector<1x256xf32> to vector<8x256xf32>
    %13 = arith.mulf %11, %12 : vector<8x256xf32>
    %14 = arith.addf %7, %13 : vector<8x256xf32>
    %c0_11 = arith.constant 0 : index
    %c2 = arith.constant 2 : index
    %15 = vector.load %arg4[%c0_11, %c2] : memref<8x4xf32, #tpu.memory_space<vmem>>, vector<8x1xf32>
    %c0_12 = arith.constant 0 : index
    %c2_13 = arith.constant 2 : index
    %c0_14 = arith.constant 0 : index
    %16 = vector.load %arg2[%c0_12, %c2_13, %c0_14] : memref<1x4x256xf32, #tpu.memory_space<vmem>>, vector<1x1x256xf32>
    %17 = vector.shape_cast %16 : vector<1x1x256xf32> to vector<1x256xf32>
    %18 = vector.broadcast %15 : vector<8x1xf32> to vector<8x256xf32>
    %19 = vector.broadcast %17 : vector<1x256xf32> to vector<8x256xf32>
    %20 = arith.mulf %18, %19 : vector<8x256xf32>
    %21 = arith.addf %14, %20 : vector<8x256xf32>
    %c0_15 = arith.constant 0 : index
    %c3 = arith.constant 3 : index
    %22 = vector.load %arg4[%c0_15, %c3] : memref<8x4xf32, #tpu.memory_space<vmem>>, vector<8x1xf32>
    %c0_16 = arith.constant 0 : index
    %c3_17 = arith.constant 3 : index
    %c0_18 = arith.constant 0 : index
    %23 = vector.load %arg2[%c0_16, %c3_17, %c0_18] : memref<1x4x256xf32, #tpu.memory_space<vmem>>, vector<1x1x256xf32>
    %24 = vector.shape_cast %23 : vector<1x1x256xf32> to vector<1x256xf32>
    %25 = vector.broadcast %22 : vector<8x1xf32> to vector<8x256xf32>
    %26 = vector.broadcast %24 : vector<1x256xf32> to vector<8x256xf32>
    %27 = arith.mulf %25, %26 : vector<8x256xf32>
    %28 = arith.addf %21, %27 : vector<8x256xf32>
    %c0_19 = arith.constant 0 : index
    %c0_20 = arith.constant 0 : index
    %29 = vector.load %arg5[%c0_19, %c0_20] : memref<8x4xf32, #tpu.memory_space<vmem>>, vector<8x1xf32>
    %c0_21 = arith.constant 0 : index
    %c0_22 = arith.constant 0 : index
    %c0_23 = arith.constant 0 : index
    %30 = vector.load %arg3[%c0_21, %c0_22, %c0_23] : memref<1x4x256xf32, #tpu.memory_space<vmem>>, vector<1x1x256xf32>
    %31 = vector.shape_cast %30 : vector<1x1x256xf32> to vector<1x256xf32>
    %32 = vector.broadcast %29 : vector<8x1xf32> to vector<8x256xf32>
    %33 = vector.broadcast %31 : vector<1x256xf32> to vector<8x256xf32>
    %34 = arith.mulf %32, %33 : vector<8x256xf32>
    %35 = arith.addf %28, %34 : vector<8x256xf32>
    %c0_24 = arith.constant 0 : index
    %c1_25 = arith.constant 1 : index
    %36 = vector.load %arg5[%c0_24, %c1_25] : memref<8x4xf32, #tpu.memory_space<vmem>>, vector<8x1xf32>
    %c0_26 = arith.constant 0 : index
    %c1_27 = arith.constant 1 : index
    %c0_28 = arith.constant 0 : index
    %37 = vector.load %arg3[%c0_26, %c1_27, %c0_28] : memref<1x4x256xf32, #tpu.memory_space<vmem>>, vector<1x1x256xf32>
    %38 = vector.shape_cast %37 : vector<1x1x256xf32> to vector<1x256xf32>
    %39 = vector.broadcast %36 : vector<8x1xf32> to vector<8x256xf32>
    %40 = vector.broadcast %38 : vector<1x256xf32> to vector<8x256xf32>
    %41 = arith.mulf %39, %40 : vector<8x256xf32>
    %42 = arith.addf %35, %41 : vector<8x256xf32>
    %c0_29 = arith.constant 0 : index
    %c2_30 = arith.constant 2 : index
    %43 = vector.load %arg5[%c0_29, %c2_30] : memref<8x4xf32, #tpu.memory_space<vmem>>, vector<8x1xf32>
    %c0_31 = arith.constant 0 : index
    %c2_32 = arith.constant 2 : index
    %c0_33 = arith.constant 0 : index
    %44 = vector.load %arg3[%c0_31, %c2_32, %c0_33] : memref<1x4x256xf32, #tpu.memory_space<vmem>>, vector<1x1x256xf32>
    %45 = vector.shape_cast %44 : vector<1x1x256xf32> to vector<1x256xf32>
    %46 = vector.broadcast %43 : vector<8x1xf32> to vector<8x256xf32>
    %47 = vector.broadcast %45 : vector<1x256xf32> to vector<8x256xf32>
    %48 = arith.mulf %46, %47 : vector<8x256xf32>
    %49 = arith.addf %42, %48 : vector<8x256xf32>
    %c0_34 = arith.constant 0 : index
    %c3_35 = arith.constant 3 : index
    %50 = vector.load %arg5[%c0_34, %c3_35] : memref<8x4xf32, #tpu.memory_space<vmem>>, vector<8x1xf32>
    %c0_36 = arith.constant 0 : index
    %c3_37 = arith.constant 3 : index
    %c0_38 = arith.constant 0 : index
    %51 = vector.load %arg3[%c0_36, %c3_37, %c0_38] : memref<1x4x256xf32, #tpu.memory_space<vmem>>, vector<1x1x256xf32>
    %52 = vector.shape_cast %51 : vector<1x1x256xf32> to vector<1x256xf32>
    %53 = vector.broadcast %50 : vector<8x1xf32> to vector<8x256xf32>
    %54 = vector.broadcast %52 : vector<1x256xf32> to vector<8x256xf32>
    %55 = arith.mulf %53, %54 : vector<8x256xf32>
    %56 = arith.addf %49, %55 : vector<8x256xf32>
    %cst = arith.constant 0.000000e+00 : f32
    %57 = vector.broadcast %cst : f32 to vector<8x256xf32>
    %58 = arith.maximumf %56, %57 : vector<8x256xf32>
    %c0_39 = arith.constant 0 : index
    %c0_40 = arith.constant 0 : index
    %59 = vector.load %arg6[%c0_39, %c0_40] : memref<8x1xf32, #tpu.memory_space<vmem>>, vector<8x1xf32>
    %60 = vector.broadcast %59 : vector<8x1xf32> to vector<8x256xf32>
    %61 = arith.mulf %58, %60 : vector<8x256xf32>
    %cst_41 = arith.constant dense<0.000000e+00> : vector<256xf32>
    %62 = vector.multi_reduction <add>, %61, %cst_41 [0] : vector<8x256xf32> to vector<256xf32>
    %63 = vector.shape_cast %62 : vector<256xf32> to vector<1x256xf32>
    %64 = arith.negf %63 : vector<1x256xf32>
    %65 = math.exp %64 : vector<1x256xf32>
    %cst_42 = arith.constant 1.000000e+00 : f32
    %66 = vector.broadcast %cst_42 : f32 to vector<1x256xf32>
    %67 = arith.addf %66, %65 : vector<1x256xf32>
    %68 = arith.divf %66, %67 : vector<1x256xf32>
    %69 = vector.broadcast %68 : vector<1x256xf32> to vector<4x256xf32>
    %70 = arith.mulf %1, %69 : vector<4x256xf32>
    %c0_43 = arith.constant 0 : index
    %c0_44 = arith.constant 0 : index
    %c0_45 = arith.constant 0 : index
    %71 = vector.load %arg7[%c0_43, %c0_44, %c0_45] : memref<1x4x256xf32, #tpu.memory_space<vmem>>, vector<1x4x256xf32>
    %72 = vector.shape_cast %71 : vector<1x4x256xf32> to vector<4x256xf32>
    %73 = vector.shape_cast %70 : vector<4x256xf32> to vector<1x4x256xf32>
    tpu.vector_store %arg7[%c0_43, %c0_44, %c0_45], %73 {strides = array<i32>} : memref<1x4x256xf32, #tpu.memory_space<vmem>>, vector<1x4x256xf32>,
    return
  }
  func.func @transform_0(%arg0: i32, %arg1: i32) -> (i32, i32, i32) {
    %c0_i32 = arith.constant 0 : i32
    %c0_i32_0 = arith.constant 0 : i32
    return %arg0, %c0_i32, %arg1 : i32, i32, i32
  }
  func.func @transform_1(%arg0: i32, %arg1: i32) -> (i32, i32, i32) {
    %c0_i32 = arith.constant 0 : i32
    %c0_i32_0 = arith.constant 0 : i32
    return %arg0, %c0_i32, %arg1 : i32, i32, i32
  }
  func.func @transform_2(%arg0: i32, %arg1: i32) -> (i32, i32) {
    %c0_i32 = arith.constant 0 : i32
    %c0_i32_0 = arith.constant 0 : i32
    %c0_i32_1 = arith.constant 0 : i32
    return %c0_i32, %c0_i32_0 : i32, i32
  }
  func.func @transform_3(%arg0: i32, %arg1: i32) -> (i32, i32) {
    %c0_i32 = arith.constant 0 : i32
    %c0_i32_0 = arith.constant 0 : i32
    %c0_i32_1 = arith.constant 0 : i32
    return %c0_i32, %c0_i32_0 : i32, i32
  }
  func.func @transform_4(%arg0: i32, %arg1: i32) -> (i32, i32) {
    %c0_i32 = arith.constant 0 : i32
    %c0_i32_0 = arith.constant 0 : i32
    %c0_i32_1 = arith.constant 0 : i32
    return %c0_i32, %c0_i32_0 : i32, i32
  }
  func.func @transform_5(%arg0: i32, %arg1: i32) -> (i32, i32, i32) {
    %c0_i32 = arith.constant 0 : i32
    %c0_i32_0 = arith.constant 0 : i32
    return %arg0, %c0_i32, %arg1 : i32, i32, i32
  }
}

</mosaic_0001>

<llo_original>
// kernel: tpu_custom_call.1
$region0: #{tpu_custom_call.1}
  #allocation0 [shape = 'u32[]', space=smem, size = 0x4, offset = 0x4, fixed_abs, tag = 'smem constant byte address 0x4 - core index']
  #allocation1 [shape = 'u32[72,128]{1,0:T(1,128)}', space=vmem, size = 0x9000, scoped, tag = 'internal scratch']
  %s0 = inlined_call_operand.vmem [shape: f32[2,4,256], index: 0, kind: input, shape index: {}]
  %s1 = inlined_call_operand.hbm [shape: f32[2,4,256], index: 1, kind: input, shape index: {}]
  %s2 = inlined_call_operand.vmem [shape: f32[8,4], index: 2, kind: input, shape index: {}]
  %s3 = inlined_call_operand.vmem [shape: f32[8,4], index: 3, kind: input, shape index: {}]
  %s4 = inlined_call_operand.vmem [shape: f32[8,1], index: 4, kind: input, shape index: {}]
  %s5 = inlined_call_operand.hbm [shape: f32[2,4,256], index: 5, kind: output, shape index: {}]
  %s6 = sld [smem:[#allocation0]]
  $region57: #{tpu_custom_call.1} parent=0
    _
  %s8 = ssub.s32 1, %s6
  %s9 = scalar_select 0, %s8, %s6
  $region1: #{tpu_custom_call.1} parent=0
    #allocation2 [shape = 'u8[8192]{0}', space=vmem, size = 0x2000, scoped, tag = 'input window, operand 1']
    #allocation3 [shape = 's32[2]{0}', space=sflag, size = 0x8, scoped, tag = 'scoped memory for tpu_custom_call.1']
    #allocation4 [shape = 's32[2]{0}', space=sflag, size = 0x8, scoped, tag = 'scoped memory for tpu_custom_call.1']
    #allocation5 [shape = 'u8[8192]{0}', space=vmem, size = 0x2000, scoped, tag = 'output window, operand 0']
    %10 = vsyncpa [#allocation3], 0
    %s11 = scalar_lea.sflag [#allocation3], 1
    %12 = vsyncpa %s11, 0
    %13 = vsyncpa [#allocation4], 0
    %s14 = scalar_lea.sflag [#allocation4], 1
    %15 = vsyncpa %s14, 0
    loop: start=0, step=1, limit=4
    $region2: #{tpu_custom_call.1} parent=1 // loop_pre_header
      _
    $region3: #{tpu_custom_call.1} parent=1 // loop_header
      %s17 = sphi 0, %s21
      %p18 = scmp.ge.s32.totalorder %s17, 4
      %s24 = sphi 0, %s36
      %s25 = sphi 0, %s32
      %s26 = sphi 0, %s24
      %s27 = sphi 0, %s25
      %s28 = sphi 0, %s26
      %s29 = sphi 0, %s27
      %s41 = sphi 0, %s43
      %s44 = sphi 0, %s41
      %s45 = sphi 0, %s44
      %s61 = sphi 0, %s45
      %s69 = sphi 0, %s71
      %s72 = sphi 0, %s69
      %s73 = sphi 0, %s72
      %s89 = sphi 0, %s73
      %s93 = sphi 0, %s93
      %s95 = sphi 0, %s93
      %s96 = sphi 0, %s95
      %s110 = sphi 0, %s96
      %s114 = sphi 0, %s114
      %s116 = sphi 0, %s114
      %s117 = sphi 0, %s116
      %s131 = sphi 0, %s117
      %s135 = sphi 0, %s135
      %s137 = sphi 0, %s135
      %s138 = sphi 0, %s137
      %s152 = sphi 0, %s138
      %s160 = sphi 0, %s162
      %s163 = sphi 0, %s160
      %s164 = sphi 0, %s163
      %s180 = sphi 0, %s164
    $region4: #{tpu_custom_call.1} parent=1 // loop_header_branch
      %20 = sbr.rel (%p18) target = $region8
    $region5: #{tpu_custom_call.1} parent=1 // loop_body
      %s22 = ssub.s32 %s17, 1
      %s23 = ssub.s32 %s17, 2
      %s30 = sadd.s32 1, %s25
      %p31 = scmp.ge.s32.totalorder %s30, 1
      %s32 = scalar_select %p31, 0, %s30
      %s33 = sadd.s32 1, %s24
      %s34 = scalar_select %p31, %s33, %s24
      %p35 = scmp.ge.s32.totalorder %s34, 2
      %s36 = scalar_select %p35, 0, %s34
      %s37 = ssub.s32 %s24, %s36
      %s38 = ssub.s32 %s25, %s32
      %s39 = sor.u32 %s37, %s38
      %p40 = scmp.eq.s32.totalorder %s39, 0
      %s42 = sadd.s32 %s41, 1
      %s43 = scalar_select %p40, %s41, %s42
      %p46 = pneg %p40
      %p47 = scmp.eq.s32.totalorder %s17, 1
      %p48 = por %p46, %p47
      %p49 = scmp.ne.s32.totalorder %s41, %s44
      %p50 = scmp.eq.s32.totalorder %s17, 0
      %p51 = por %p49, %p50
      %p52 = scmp.ne.s32.totalorder %s41, %s44
      %p53 = scmp.eq.s32.totalorder %s22, 1
      %p54 = por %p52, %p53
      %p55 = scmp.ne.s32.totalorder %s44, %s45
      %p56 = scmp.eq.s32.totalorder %s22, 0
      %p57 = por %p55, %p56
      %p58 = scmp.ne.s32.totalorder %s44, %s45
      %p59 = scmp.eq.s32.totalorder %s23, 1
      %p60 = por %p58, %p59
      %p62 = scmp.ne.s32.totalorder %s45, %s61
      %p63 = scmp.eq.s32.totalorder %s23, 0
      %p64 = por %p62, %p63
      %s65 = ssub.s32 %s24, %s36
      %s66 = ssub.s32 %s25, %s32
      %s67 = sor.u32 %s65, %s66
      %p68 = scmp.eq.s32.totalorder %s67, 0
      %s70 = sadd.s32 %s69, 1
      %s71 = scalar_select %p68, %s69, %s70
      %p74 = pneg %p68
      %p75 = scmp.eq.s32.totalorder %s17, 1
      %p76 = por %p74, %p75
      %p77 = scmp.ne.s32.totalorder %s69, %s72
      %p78 = scmp.eq.s32.totalorder %s17, 0
      %p79 = por %p77, %p78
      %p80 = scmp.ne.s32.totalorder %s69, %s72
      %p81 = scmp.eq.s32.totalorder %s22, 1
      %p82 = por %p80, %p81
      %p83 = scmp.ne.s32.totalorder %s72, %s73
      %p84 = scmp.eq.s32.totalorder %s22, 0
      %p85 = por %p83, %p84
      %p86 = scmp.ne.s32.totalorder %s72, %s73
      %p87 = scmp.eq.s32.totalorder %s23, 1
      %p88 = por %p86, %p87
      %p90 = scmp.ne.s32.totalorder %s73, %s89
      %p91 = scmp.eq.s32.totalorder %s23, 0
      %p92 = por %p90, %p91
      %s94 = sadd.s32 %s93, 1
      %p97 = scmp.eq.s32.totalorder %s17, 1
      %p98 = scmp.ne.s32.totalorder %s93, %s95
      %p99 = scmp.eq.s32.totalorder %s17, 0
      %p100 = por %p98, %p99
      %p101 = scmp.ne.s32.totalorder %s93, %s95
      %p102 = scmp.eq.s32.totalorder %s22, 1
      %p103 = por %p101, %p102
      %p104 = scmp.ne.s32.totalorder %s95, %s96
      %p105 = scmp.eq.s32.totalorder %s22, 0
      %p106 = por %p104, %p105
      %p107 = scmp.ne.s32.totalorder %s95, %s96
      %p108 = scmp.eq.s32.totalorder %s23, 1
      %p109 = por %p107, %p108
      %p111 = scmp.ne.s32.totalorder %s96, %s110
      %p112 = scmp.eq.s32.totalorder %s23, 0
      %p113 = por %p111, %p112
      %s115 = sadd.s32 %s114, 1
      %p118 = scmp.eq.s32.totalorder %s17, 1
      %p119 = scmp.ne.s32.totalorder %s114, %s116
      %p120 = scmp.eq.s32.totalorder %s17, 0
      %p121 = por %p119, %p120
      %p122 = scmp.ne.s32.totalorder %s114, %s116
      %p123 = scmp.eq.s32.totalorder %s22, 1
      %p124 = por %p122, %p123
      %p125 = scmp.ne.s32.totalorder %s116, %s117
      %p126 = scmp.eq.s32.totalorder %s22, 0
      %p127 = por %p125, %p126
      %p128 = scmp.ne.s32.totalorder %s116, %s117
      %p129 = scmp.eq.s32.totalorder %s23, 1
      %p130 = por %p128, %p129
      %p132 = scmp.ne.s32.totalorder %s117, %s131
      %p133 = scmp.eq.s32.totalorder %s23, 0
      %p134 = por %p132, %p133
      %s136 = sadd.s32 %s135, 1
      %p139 = scmp.eq.s32.totalorder %s17, 1
      %p140 = scmp.ne.s32.totalorder %s135, %s137
      %p141 = scmp.eq.s32.totalorder %s17, 0
      %p142 = por %p140, %p141
      %p143 = scmp.ne.s32.totalorder %s135, %s137
      %p144 = scmp.eq.s32.totalorder %s22, 1
      %p145 = por %p143, %p144
      %p146 = scmp.ne.s32.totalorder %s137, %s138
      %p147 = scmp.eq.s32.totalorder %s22, 0
      %p148 = por %p146, %p147
      %p149 = scmp.ne.s32.totalorder %s137, %s138
      %p150 = scmp.eq.s32.totalorder %s23, 1
      %p151 = por %p149, %p150
      %p153 = scmp.ne.s32.totalorder %s138, %s152
      %p154 = scmp.eq.s32.totalorder %s23, 0
      %p155 = por %p153, %p154
      %s156 = ssub.s32 %s24, %s36
      %s157 = ssub.s32 %s25, %s32
      %s158 = sor.u32 %s156, %s157
      %p159 = scmp.eq.s32.totalorder %s158, 0
      %s161 = sadd.s32 %s160, 1
      %s162 = scalar_select %p159, %s160, %s161
      %p165 = pneg %p159
      %p166 = scmp.eq.s32.totalorder %s17, 1
      %p167 = por %p165, %p166
      %p168 = scmp.ne.s32.totalorder %s160, %s163
      %p169 = scmp.eq.s32.totalorder %s17, 0
      %p170 = por %p168, %p169
      %p171 = scmp.ne.s32.totalorder %s160, %s163
      %p172 = scmp.eq.s32.totalorder %s22, 1
      %p173 = por %p171, %p172
      %p174 = scmp.ne.s32.totalorder %s163, %s164
      %p175 = scmp.eq.s32.totalorder %s22, 0
      %p176 = por %p174, %p175
      %p177 = scmp.ne.s32.totalorder %s163, %s164
      %p178 = scmp.eq.s32.totalorder %s23, 1
      %p179 = por %p177, %p178
      %p181 = scmp.ne.s32.totalorder %s164, %s180
      %p182 = scmp.eq.s32.totalorder %s23, 0
      %p183 = por %p181, %p182
      %p184 = scmp.le.s32.totalorder 1, %s17
      %p185 = scmp.lt.s32.totalorder %s17, 3
      %p186 = pnand %p184, %p185
      %p187 = pneg %p186
      // Predicated region
      $region9: #{tpu_custom_call.1} parent=5 // pred_check
        _
      $region10: #{tpu_custom_call.1} parent=5 // pred_check_branch
        %189 = sbr.rel (%p186) target = $region12
      $region11: #{tpu_custom_call.1} parent=5 // pred_region
        %s190 = ssub.s32 %s17, 1
        // Predicated region
        $region13: #{tpu_custom_call.1} parent=11 // pred_check
          %p191 = pneg %p106
        $region14: #{tpu_custom_call.1} parent=11 // pred_check_branch
          %193 = sbr.rel (%p191) target = $region16
        $region15: #{tpu_custom_call.1} parent=11 // pred_region
          _
        $region16: #{tpu_custom_call.1} parent=11 // pred_fallthru
          _
        // Predicated region
        $region17: #{tpu_custom_call.1} parent=11 // pred_check
          %p194 = pneg %p127
        $region18: #{tpu_custom_call.1} parent=11 // pred_check_branch
          %196 = sbr.rel (%p194) target = $region20
        $region19: #{tpu_custom_call.1} parent=11 // pred_region
          _
        $region20: #{tpu_custom_call.1} parent=11 // pred_fallthru
          _
        // Predicated region
        $region21: #{tpu_custom_call.1} parent=11 // pred_check
          %p197 = pneg %p148
        $region22: #{tpu_custom_call.1} parent=11 // pred_check_branch
          %199 = sbr.rel (%p197) target = $region24
        $region23: #{tpu_custom_call.1} parent=11 // pred_region
          _
        $region24: #{tpu_custom_call.1} parent=11 // pred_fallthru
          _
      $region12: #{tpu_custom_call.1} parent=5 // pred_fallthru
        _
      %p200 = scmp.lt.s32.totalorder %s17, 2
      // Predicated region
      $region25: #{tpu_custom_call.1} parent=5 // pred_check
        %p201 = pneg %p200
      $region26: #{tpu_custom_call.1} parent=5 // pred_check_branch
        %203 = sbr.rel (%p201) target = $region28
      $region27: #{tpu_custom_call.1} parent=5 // pred_region
        // Predicated region
        $region29: #{tpu_custom_call.1} parent=27 // pred_check
          %p204 = pneg %p51
        $region30: #{tpu_custom_call.1} parent=27 // pred_check_branch
          %206 = sbr.rel (%p204) target = $region32
        $region31: #{tpu_custom_call.1} parent=27 // pred_region
          %s207 = smul.u32 2, %s25
          %p208 = scmp.lt.s32.totalorder %s24, 1
          %s209 = scalar_select %p208, %s24, 1
          %p210 = scmp.lt.s32.totalorder %s207, 1
          %s211 = scalar_select %p210, %s207, 1
          %s212 = smul.addr %s209, 2
          %s213 = sadd.s32 %s211, %s212
          %s214 = smul.addr %s213, 4
          %s215 = scalar_lea.vmem %s0, %s214
          %s216 = smul.u32 2, %s25
        $region32: #{tpu_custom_call.1} parent=27 // pred_fallthru
          _
        // Predicated region
        $region33: #{tpu_custom_call.1} parent=27 // pred_check
          %p217 = pneg %p79
        $region34: #{tpu_custom_call.1} parent=27 // pred_check_branch
          %219 = sbr.rel (%p217) target = $region36
        $region35: #{tpu_custom_call.1} parent=27 // pred_region
          %s220 = sand.u32 %s69, 1
          %s221 = scalar_lea.sflag [#allocation3], %s220
          %s222 = sand.u32 %s69, 1
          %s223 = smul.addr %s222, 8
          %s224 = scalar_lea.vmem [#allocation2], %s223
          %s225 = smul.u32 2, %s25
          %227 = vsyncadd %s221, 0
          %s228 = smul.addr %s24, 2
          %s229 = sadd.s32 %s225, %s228
          %s230 = smul.addr %s229, 4
          %s231 = scalar_lea.hbm %s1, %s230
          %s233 = sshll.u32 %s231, 4
          %s234 = int_to_ptr.hbm [resolvable:$true] %s233
          %s235 = sshll.u32 %s224, 4
          %s236 = int_to_ptr.vmem [resolvable:$true] %s235
          %238 = dma.hbm_to_vmem [thread:$0]  %s234, 128, %s236, %s221
        $region36: #{tpu_custom_call.1} parent=27 // pred_fallthru
          _
      $region28: #{tpu_custom_call.1} parent=5 // pred_fallthru
        _
      %p239 = scmp.le.s32.totalorder 1, %s17
      %p240 = scmp.lt.s32.totalorder %s17, 3
      %p241 = pnand %p239, %p240
      %p242 = pneg %p241
      // Predicated region
      $region37: #{tpu_custom_call.1} parent=5 // pred_check
        _
      $region38: #{tpu_custom_call.1} parent=5 // pred_check_branch
        %244 = sbr.rel (%p241) target = $region40
      $region39: #{tpu_custom_call.1} parent=5 // pred_region
        %s245 = ssub.s32 %s17, 1
        %s246 = sand.u32 %s72, 1
        %s247 = scalar_lea.sflag [#allocation3], %s246
        %s248 = sand.u32 %s72, 1
        %s249 = smul.addr %s248, 8
        %s250 = scalar_lea.vmem [#allocation2], %s249
        // Predicated region
        $region41: #{tpu_custom_call.1} parent=39 // pred_check
          %p251 = pneg %p85
        $region42: #{tpu_custom_call.1} parent=39 // pred_check_branch
          %253 = sbr.rel (%p251) target = $region44
        $region43: #{tpu_custom_call.1} parent=39 // pred_region
          %255 = dma.done %s247, 128
        $region44: #{tpu_custom_call.1} parent=39 // pred_fallthru
          _
        %s256 = smul.u32 2, %s27
        %p257 = scmp.lt.s32.totalorder %s26, 1
        %s258 = scalar_select %p257, %s26, 1
        %p259 = scmp.lt.s32.totalorder %s256, 1
        %s260 = scalar_select %p259, %s256, 1
        %s261 = smul.addr %s258, 2
        %s262 = sadd.s32 %s260, %s261
        %s263 = smul.addr %s262, 4
        %s264 = scalar_lea.vmem %s0, %s263
        %p265 = pneg %p57
        %p266 = pneg %p54
        %s267 = sand.u32 %s72, 1
        %s268 = scalar_lea.sflag [#allocation3], %s267
        %s269 = sand.u32 %s72, 1
        %s270 = smul.addr %s269, 8
        %s271 = scalar_lea.vmem [#allocation2], %s270
        %p272 = pneg %p85
        %p273 = pneg %p82
        %p274 = pneg %p106
        %p275 = pneg %p103
        %p276 = pneg %p127
        %p277 = pneg %p124
        %p278 = pneg %p148
        %p279 = pneg %p145
        %p280 = pneg %p176
        %p281 = pneg %p173
        %s282 = sand.u32 %s163, 1
        %s283 = scalar_lea.sflag [#allocation4], %s282
        %s284 = sand.u32 %s163, 1
        %s285 = smul.addr %s284, 8
        %s286 = scalar_lea.vmem [#allocation5], %s285
        %s287 = smul.u32 2, %s27
        %p288 = scmp.lt.s32.totalorder %s26, 1
        %s289 = scalar_select %p288, %s26, 1
        %p290 = scmp.lt.s32.totalorder %s287, 1
        %s291 = scalar_select %p290, %s287, 1
        %s292 = smul.addr %s289, 2
        %s293 = sadd.s32 %s291, %s292
        %s294 = smul.addr %s293, 4
        %s295 = scalar_lea.vmem %s0, %s294
        %s296 = smul.u32 2, %s27
        %s297 = smul.u32 2, %s27
        %s298 = smul.u32 2, %s27
        %v299 = vld [vmem:[%s250] sm:$0xff]
        %v300 = vld [vmem:[%s2] sm:$0xff]
        %v301 = vld [vmem:[%s295] ss:$4 sm:$0x3]
        %303 = vset.pattern.permute.xlu0 0
        %304 = vperm.xlu0 %303, %v300
        %v305 = vpop.permute.xlu0 %304
        %v308 = vperm.slane %v301, 0
        %v309 = vperm.slane %v301, 1
        %v312 = vmul.f32 %v305, %v308
        %v313 = vmul.f32 %v305, %v309
        %s314 = scalar_lea.vmem %s295, 1
        %v315 = vld [vmem:[%s314] ss:$4 sm:$0x3]
        %316 = vset.pattern.permute.xlu0 1
        %317 = vperm.xlu0 %316, %v300
        %v318 = vpop.permute.xlu0 %317
        %v321 = vperm.slane %v315, 0
        %v322 = vperm.slane %v315, 1
        %v325 = vmul.f32 %v318, %v321
        %v326 = vmul.f32 %v318, %v322
        %v327 = vadd.f32 %v312, %v325
        %v328 = vadd.f32 %v313, %v326
        %s329 = scalar_lea.vmem %s295, 2
        %v330 = vld [vmem:[%s329] ss:$4 sm:$0x3]
        %331 = vset.pattern.permute.xlu0 2
        %332 = vperm.xlu0 %331, %v300
        %v333 = vpop.permute.xlu0 %332
        %v336 = vperm.slane %v330, 0
        %v337 = vperm.slane %v330, 1
        %v340 = vmul.f32 %v333, %v336
        %v341 = vmul.f32 %v333, %v337
        %v342 = vadd.f32 %v327, %v340
        %v343 = vadd.f32 %v328, %v341
        %s344 = scalar_lea.vmem %s295, 3
        %v345 = vld [vmem:[%s344] ss:$4 sm:$0x3]
        %346 = vset.pattern.permute.xlu0 3
        %347 = vperm.xlu0 %346, %v300
        %v348 = vpop.permute.xlu0 %347
        %v351 = vperm.slane %v345, 0
        %v352 = vperm.slane %v345, 1
        %v355 = vmul.f32 %v348, %v351
        %v356 = vmul.f32 %v348, %v352
        %v357 = vadd.f32 %v342, %v355
        %v358 = vadd.f32 %v343, %v356
        %v359 = vld [vmem:[%s3] sm:$0xff]
        %v360 = vld [vmem:[%s250] ss:$4 sm:$0x3]
        %362 = vset.pattern.permute.xlu0 0
        %363 = vperm.xlu0 %362, %v359
        %v364 = vpop.permute.xlu0 %363
        %v367 = vperm.slane %v360, 0
        %v368 = vperm.slane %v360, 1
        %v371 = vmul.f32 %v364, %v367
        %v372 = vmul.f32 %v364, %v368
        %v373 = vadd.f32 %v357, %v371
        %v374 = vadd.f32 %v358, %v372
        %s375 = scalar_lea.vmem %s250, 1 [#allocation2]
        %v376 = vld [vmem:[%s375] ss:$4 sm:$0x3]
        %377 = vset.pattern.permute.xlu0 1
        %378 = vperm.xlu0 %377, %v359
        %v379 = vpop.permute.xlu0 %378
        %v382 = vperm.slane %v376, 0
        %v383 = vperm.slane %v376, 1
        %v386 = vmul.f32 %v379, %v382
        %v387 = vmul.f32 %v379, %v383
        %v388 = vadd.f32 %v373, %v386
        %v389 = vadd.f32 %v374, %v387
        %s390 = scalar_lea.vmem %s250, 2 [#allocation2]
        %v391 = vld [vmem:[%s390] ss:$4 sm:$0x3]
        %392 = vset.pattern.permute.xlu0 2
        %393 = vperm.xlu0 %392, %v359
        %v394 = vpop.permute.xlu0 %393
        %v397 = vperm.slane %v391, 0
        %v398 = vperm.slane %v391, 1
        %v401 = vmul.f32 %v394, %v397
        %v402 = vmul.f32 %v394, %v398
        %v403 = vadd.f32 %v388, %v401
        %v404 = vadd.f32 %v389, %v402
        %s405 = scalar_lea.vmem %s250, 3 [#allocation2]
        %v406 = vld [vmem:[%s405] ss:$4 sm:$0x3]
        %407 = vset.pattern.permute.xlu0 3
        %408 = vperm.xlu0 %407, %v359
        %v409 = vpop.permute.xlu0 %408
        %v412 = vperm.slane %v406, 0
        %v413 = vperm.slane %v406, 1
        %v416 = vmul.f32 %v409, %v412
        %v417 = vmul.f32 %v409, %v413
        %v418 = vadd.f32 %v403, %v416
        %v419 = vadd.f32 %v404, %v417
        %v420 = vmax.f32 %v418, 0.0
        %v421 = vmax.f32 %v419, 0.0
        %v422 = vld [vmem:[%s4] sm:$0xff]
        %424 = vset.pattern.permute.xlu0 0
        %425 = vperm.xlu0 %424, %v422
        %v426 = vpop.permute.xlu0 %425
        %v428 = vmul.f32 %v420, %v426
        %v429 = vmul.f32 %v421, %v426
        %v430 = vrot.slane %v428, 4
        %v431 = vadd.f32 %v428, %v430
        %v432 = vrot.slane %v431, 2
        %v433 = vadd.f32 %v431, %v432
        %v434 = vrot.slane %v433, 1
        %v435 = vadd.f32 %v433, %v434
        %v436 = vrot.slane %v429, 4
        %v437 = vadd.f32 %v429, %v436
        %v438 = vrot.slane %v437, 2
        %v439 = vadd.f32 %v437, %v438
        %v440 = vrot.slane %v439, 1
        %v441 = vadd.f32 %v439, %v440
        %v442 = vxor.u32 %v435, 2147483648
        %v443 = vxor.u32 %v441, 2147483648
        %v444 = vmul.f32 %v442, 1.442695
        %v445 = vpow.pop %v444
        %v446 = vmul.f32 %v443, 1.442695
        %v447 = vpow.pop %v446
        %v448 = vadd.f32 %v445, 1.0
        %v449 = vadd.f32 %v447, 1.0
        %v450 = vrcp.pop %v448
        %v451 = vmul.f32 %v448, %v450
        %v452 = vsub.f32 1.0, %v451
        %v453 = vmul.f32 %v450, %v452
        %v454 = vadd.f32 %v450, %v453
        %vm455 = vweird.f32 %v448
        %vm456 = vweird.f32 %v450
        %vm457 = vmor %vm455, %vm456
        %v458 = vsel %vm457, %v450, %v454
        %v459 = vand.u32 2147483647, %v448
        %vm460 = vcmp.eq.f32.partialorder %v459, 8.507059e+37
        %v461 = vand.u32 %v448, 2147483648
        %v462 = vor.u32 1.1754944e-38, %v461
        %v463 = vsel %vm460, %v462, %v458
        %v464 = vmul.f32 1.0, %v463
        %v465 = vrcp.pop %v449
        %v466 = vmul.f32 %v449, %v465
        %v467 = vsub.f32 1.0, %v466
        %v468 = vmul.f32 %v465, %v467
        %v469 = vadd.f32 %v465, %v468
        %vm470 = vweird.f32 %v449
        %vm471 = vweird.f32 %v465
        %vm472 = vmor %vm470, %vm471
        %v473 = vsel %vm472, %v465, %v469
        %v474 = vand.u32 2147483647, %v449
        %vm475 = vcmp.eq.f32.partialorder %v474, 8.507059e+37
        %v476 = vand.u32 %v449, 2147483648
        %v477 = vor.u32 1.1754944e-38, %v476
        %v478 = vsel %vm475, %v477, %v473
        %v479 = vmul.f32 1.0, %v478
        %v482 = vrot.slane %v479, 4
        %vm483 = vcmask 1043456
        %v484 = vsel %vm483, %v464, %v482
        %v486 = vmul.f32 %v299, %v484
        %487 = vst [vmem:[%s286] sm:$0xff] %v486
        %s488 = sand.u32 %s163, 1
        %s489 = scalar_lea.sflag [#allocation4], %s488
        %s490 = sand.u32 %s163, 1
        %s491 = smul.addr %s490, 8
        %s492 = scalar_lea.vmem [#allocation5], %s491
        // Predicated region
        $region45: #{tpu_custom_call.1} parent=39 // pred_check
          %p493 = pneg %p173
        $region46: #{tpu_custom_call.1} parent=39 // pred_check_branch
          %495 = sbr.rel (%p493) target = $region48
        $region47: #{tpu_custom_call.1} parent=39 // pred_region
          %s496 = smul.u32 2, %s27
          %498 = vsyncadd %s489, 0
          %s499 = smul.addr %s26, 2
          %s500 = sadd.s32 %s496, %s499
          %s501 = smul.addr %s500, 4
          %s502 = scalar_lea.hbm %s5, %s501
          %s504 = sshll.u32 %s492, 4
          %s505 = int_to_ptr.vmem [resolvable:$true] %s504
          %s506 = sshll.u32 %s502, 4
          %s507 = int_to_ptr.hbm [resolvable:$true] %s506
          %509 = dma.vmem_to_hbm [thread:$0]  %s505, 128, %s507, %s489
        $region48: #{tpu_custom_call.1} parent=39 // pred_fallthru
          _
      $region40: #{tpu_custom_call.1} parent=5 // pred_fallthru
        _
      %p510 = scmp.le.s32.totalorder 2, %s17
      // Predicated region
      $region49: #{tpu_custom_call.1} parent=5 // pred_check
        %p511 = pneg %p510
      $region50: #{tpu_custom_call.1} parent=5 // pred_check_branch
        %513 = sbr.rel (%p511) target = $region52
      $region51: #{tpu_custom_call.1} parent=5 // pred_region
        %s514 = ssub.s32 %s17, 2
        // Predicated region
        $region53: #{tpu_custom_call.1} parent=51 // pred_check
          %p515 = pneg %p179
        $region54: #{tpu_custom_call.1} parent=51 // pred_check_branch
          %517 = sbr.rel (%p515) target = $region56
        $region55: #{tpu_custom_call.1} parent=51 // pred_region
          %s518 = sand.u32 %s164, 1
          %s519 = scalar_lea.sflag [#allocation4], %s518
          %s520 = sand.u32 %s164, 1
          %s521 = smul.addr %s520, 8
          %s522 = scalar_lea.vmem [#allocation5], %s521
          %524 = dma.done %s519, 128
        $region56: #{tpu_custom_call.1} parent=51 // pred_fallthru
          _
      $region52: #{tpu_custom_call.1} parent=5 // pred_fallthru
        _
    $region6: #{tpu_custom_call.1} parent=1 // loop_footer
      %s21 = sadd.s32 1, %s17
    $region7: #{tpu_custom_call.1} parent=1 // loop_footer_branch
      %16 = sbr.rel target = $region3
    $region8: #{tpu_custom_call.1} parent=1 // loop_exit
      _
    %525 = vsyncpa [#allocation3], 1
    %s526 = scalar_lea.sflag [#allocation3], 1
    %527 = vsyncpa %s526, 1
    %528 = vsyncpa [#allocation4], 1
    %s529 = scalar_lea.sflag [#allocation4], 1
    %530 = vsyncpa %s529, 1

</llo_original>
